<compile_context>
chip_gen: v6e
topology: v6e:2x2x1
jax: 0.10.0
libtpu: 0.0.40
codegen_flags: <defaults>
</compile_context>

<pallas_src>
import functools

import jax
import jax.numpy as jnp
from jax.experimental import pallas as pl
from jax.experimental.pallas import tpu as pltpu


def _w2v_gather_kernel(widx_ref, cidx_ref, w_ref, c_ref, o_ref, wbuf, cbuf):
    # widx_ref, cidx_ref : SMEM (B_pad,) int32  -- scalar-prefetched ids
    # w_ref, c_ref       : VMEM (V, D)          -- whole tables, single copy
    # o_ref              : VMEM (TB, 1) f32     -- per-row dot products
    # wbuf, cbuf         : VMEM (TB, D) scratch -- gathered embedding rows
    tb = o_ref.shape[0]
    base = pl.program_id(0) * tb

    # Index-driven gather: one dynamic row load per batch element.  Address
    # computation rides the otherwise-idle scalar slots; work is O(TB * D).
    @pl.loop(0, tb)
    def _(b):
        wi = widx_ref[base + b]
        ci = cidx_ref[base + b]
        wbuf[pl.ds(b, 1), :] = w_ref[pl.ds(wi, 1), :]
        cbuf[pl.ds(b, 1), :] = c_ref[pl.ds(ci, 1), :]

    # Per-row dot product: VPU multiply + lane reduce over D, f32 accumulation.
    w = wbuf[...].astype(jnp.float32)
    c = cbuf[...].astype(jnp.float32)
    o_ref[...] = jnp.sum(w * c, axis=1, keepdims=True)


def _round_up(x, m):
    return ((x + m - 1) // m) * m


@functools.partial(jax.jit, static_argnames=("tb_max",))
def word2vec_forward(w, c, word, context, *, tb_max=512):
    """Fused skip-gram forward: out[b] = sum_d W[word[b], d] * C[context[b], d].

    w, c          : (V, D) embedding tables (f32 or bf16).
    word, context : (B,) integer indices.
    Returns (B,) float32.
    """
    V, D = w.shape
    B = word.shape[0]

    # Batch tiling: sublane-aligned tiles; >= 2 grid steps when B > 128 so the
    # "parallel" grid axis keeps both v7x TensorCores busy.
    b8 = _round_up(B, 8)
    if b8 <= 128:
        tb = b8
    else:
        tb = min(tb_max, _round_up(-(-b8 // 2), 8))
    b_pad = _round_up(b8, tb)
    grid = b_pad // tb

    def _prep_ids(ids):
        # Clamp so dynamic row loads can never go out of bounds; pad with 0.
        ids = jnp.clip(ids.astype(jnp.int32), 0, V - 1)
        return jnp.zeros((b_pad,), jnp.int32).at[:B].set(ids)

    widx = _prep_ids(word)
    cidx = _prep_ids(context)

    out = pl.pallas_call(
        _w2v_gather_kernel,
        out_shape=jax.ShapeDtypeStruct((b_pad, 1), jnp.float32),
        grid_spec=pltpu.PrefetchScalarGridSpec(
            num_scalar_prefetch=2,                 # widx, cidx -> SMEM
            grid=(grid,),
            in_specs=[
                # Whole tables resident in VMEM, single copy (no double buffer).
                pl.BlockSpec(memory_space=pltpu.MemorySpace.VMEM),
                pl.BlockSpec(memory_space=pltpu.MemorySpace.VMEM),
            ],
            out_specs=pl.BlockSpec((tb, 1), lambda i, wref, cref: (i, 0)),
            scratch_shapes=[
                pltpu.VMEM((tb, D), w.dtype),
                pltpu.VMEM((tb, D), c.dtype),
            ],
        ),
        compiler_params=pltpu.CompilerParams(
            dimension_semantics=("parallel",),
            vmem_limit_bytes=64 * 1024 * 1024,
        ),
    )(widx, cidx, w, c)

    # (B_pad, 1) -> (B,)  == torch .flatten() on the (B,1,1) bmm result.
    return out.reshape(-1)[:B]


class Word2VecPallas:
    """JAX/Pallas equivalent of the PyTorch Word2Vec module (forward only)."""

    def __init__(self, vocab_size, embedding_dim, key, dtype=jnp.float32):
        self.vocab_size = vocab_size
        self.embedding_dim = embedding_dim
        kw, kc = jax.random.split(key)
        # nn.Embedding default init: N(0, 1)
        self.w = jax.random.normal(kw, (vocab_size, embedding_dim), dtype)
        self.c = jax.random.normal(kc, (vocab_size, embedding_dim), dtype)

    def __call__(self, word, context):
        return word2vec_forward(self.w, self.c, word, context)


if __name__ == "__main__":
    key = jax.random.PRNGKey(0)
    vocab_size, embedding_dim, batch = 50, 32, 16

    k_model, k_word, k_ctx = jax.random.split(key, 3)
    model = Word2VecPallas(vocab_size, embedding_dim, k_model)

    word = jax.random.randint(k_word, (batch,), 0, vocab_size, dtype=jnp.int32)
    context = jax.random.randint(k_ctx, (batch,), 0, vocab_size, dtype=jnp.int32)

    out = jax.block_until_ready(model(word, context))

    # Pure-JAX reference of the PyTorch forward.
    ref = jnp.sum(model.w[word] * model.c[context], axis=-1)
    assert out.shape == (batch,), out.shape
    assert jnp.allclose(out, ref, atol=1e-5, rtol=1e-5), (out, ref)

    print("KERNEL_OK")
</pallas_src>

<mosaic_0001>
module attributes {stable_mosaic.version = 11 : i64} {
  func.func @_w2v_gather_kernel(%arg0: i32, %arg1: memref<16xi32, #tpu.memory_space<smem>>, %arg2: memref<16xi32, #tpu.memory_space<smem>>, %arg3: memref<50x32xf32, #tpu.memory_space<vmem>>, %arg4: memref<50x32xf32, #tpu.memory_space<vmem>>, %arg5: memref<16x1xf32, #tpu.memory_space<vmem>>, %arg6: memref<16x32xf32, #tpu.memory_space<vmem>>, %arg7: memref<16x32xf32, #tpu.memory_space<vmem>>) attributes {dimension_semantics = [#tpu.dimension_semantics<parallel>], iteration_bounds = array<i64: 1>, scalar_prefetch = 2 : i64, scratch_operands = 2 : i64, tpu.core_type = #tpu.core_type<tc>, window_params = [{pipeline_mode = #tpu.pipeline_mode<synchronous>, transform_indices = @transform_0, window_bounds = array<i64: 50, 32>}, {pipeline_mode = #tpu.pipeline_mode<synchronous>, transform_indices = @transform_1, window_bounds = array<i64: 50, 32>}, {transform_indices = @transform_2, window_bounds = array<i64: 16, 1>}]} {
    %c16_i32 = arith.constant 16 : i32
    %0 = arith.muli %arg0, %c16_i32 : i32
    %c0_i32 = arith.constant 0 : i32
    %c16_i32_0 = arith.constant 16 : i32
    %1 = arith.addi %c0_i32, %c16_i32_0 : i32
    %c1_i32 = arith.constant 1 : i32
    scf.for %arg8 = %c0_i32 to %1 step %c1_i32  : i32 {
      %c1_i32_7 = arith.constant 1 : i32
      %8 = arith.muli %arg8, %c1_i32_7 : i32
      %c0_i32_8 = arith.constant 0 : i32
      %9 = arith.addi %c0_i32_8, %8 : i32
      %10 = arith.addi %0, %9 : i32
      %11 = arith.index_cast %10 : i32 to index
      %12 = memref.load %arg1[%11] : memref<16xi32, #tpu.memory_space<smem>>
      %13 = arith.addi %0, %9 : i32
      %14 = arith.index_cast %13 : i32 to index
      %15 = memref.load %arg2[%14] : memref<16xi32, #tpu.memory_space<smem>>
      %16 = arith.index_cast %12 : i32 to index
      %c0_9 = arith.constant 0 : index
      %17 = vector.load %arg3[%16, %c0_9] : memref<50x32xf32, #tpu.memory_space<vmem>>, vector<1x32xf32>
      %18 = arith.index_cast %9 : i32 to index
      %c0_10 = arith.constant 0 : index
      %19 = vector.load %arg6[%18, %c0_10] : memref<16x32xf32, #tpu.memory_space<vmem>>, vector<1x32xf32>
      tpu.vector_store %arg6[%18, %c0_10], %17 {strides = array<i32>} : memref<16x32xf32, #tpu.memory_space<vmem>>, vector<1x32xf32>,
      %20 = arith.index_cast %15 : i32 to index
      %c0_11 = arith.constant 0 : index
      %21 = vector.load %arg4[%20, %c0_11] : memref<50x32xf32, #tpu.memory_space<vmem>>, vector<1x32xf32>
      %22 = arith.index_cast %9 : i32 to index
      %c0_12 = arith.constant 0 : index
      %23 = vector.load %arg7[%22, %c0_12] : memref<16x32xf32, #tpu.memory_space<vmem>>, vector<1x32xf32>
      tpu.vector_store %arg7[%22, %c0_12], %21 {strides = array<i32>} : memref<16x32xf32, #tpu.memory_space<vmem>>, vector<1x32xf32>,
    }
    %c16_i32_1 = arith.constant 16 : i32
    %c0 = arith.constant 0 : index
    %c0_2 = arith.constant 0 : index
    %2 = vector.load %arg6[%c0, %c0_2] : memref<16x32xf32, #tpu.memory_space<vmem>>, vector<16x32xf32>
    %c0_3 = arith.constant 0 : index
    %c0_4 = arith.constant 0 : index
    %3 = vector.load %arg7[%c0_3, %c0_4] : memref<16x32xf32, #tpu.memory_space<vmem>>, vector<16x32xf32>
    %4 = arith.mulf %2, %3 : vector<16x32xf32>
    %cst = arith.constant dense<0.000000e+00> : vector<16xf32>
    %5 = vector.multi_reduction <add>, %4, %cst [1] : vector<16x32xf32> to vector<16xf32>
    %6 = vector.shape_cast %5 : vector<16xf32> to vector<16x1xf32>
    %c0_5 = arith.constant 0 : index
    %c0_6 = arith.constant 0 : index
    %7 = vector.load %arg5[%c0_5, %c0_6] : memref<16x1xf32, #tpu.memory_space<vmem>>, vector<16x1xf32>
    tpu.vector_store %arg5[%c0_5, %c0_6], %6 {strides = array<i32>} : memref<16x1xf32, #tpu.memory_space<vmem>>, vector<16x1xf32>,
    return
  }
  func.func @transform_0(%arg0: i32, %arg1: memref<16xi32, #tpu.memory_space<smem>>, %arg2: memref<16xi32, #tpu.memory_space<smem>>) -> (i32, i32) {
    %c0_i32 = arith.constant 0 : i32
    %c0_i32_0 = arith.constant 0 : i32
    %c0_i32_1 = arith.constant 0 : i32
    return %c0_i32, %c0_i32_0 : i32, i32
  }
  func.func @transform_1(%arg0: i32, %arg1: memref<16xi32, #tpu.memory_space<smem>>, %arg2: memref<16xi32, #tpu.memory_space<smem>>) -> (i32, i32) {
    %c0_i32 = arith.constant 0 : i32
    %c0_i32_0 = arith.constant 0 : i32
    %c0_i32_1 = arith.constant 0 : i32
    return %c0_i32, %c0_i32_0 : i32, i32
  }
  func.func @transform_2(%arg0: i32, %arg1: memref<16xi32, #tpu.memory_space<smem>>, %arg2: memref<16xi32, #tpu.memory_space<smem>>) -> (i32, i32) {
    %c0_i32 = arith.constant 0 : i32
    %c0_i32_0 = arith.constant 0 : i32
    return %arg0, %c0_i32 : i32, i32
  }
}

</mosaic_0001>

<llo_original>
// kernel: word2vec_forward.1
$region0: #{word2vec_forward.1}
  #allocation0 [shape = 'u32[]', space=smem, size = 0x4, offset = 0x4, fixed_abs, tag = 'smem constant byte address 0x4 - core index']
  #allocation1 [shape = 'u32[144,128]{1,0:T(1,128)}', space=vmem, size = 0x12000, scoped, tag = 'internal scratch']
  #allocation2 [shape = 'f32[16,32]{1,0:T(8,128)}', space=vmem, size = 0x2000, scoped, tag = 'scratch operand']
  #allocation3 [shape = 'f32[16,32]{1,0:T(8,128)}', space=vmem, size = 0x2000, scoped, tag = 'scratch operand']
  #allocation4 [shape = 's32[1]{0}', space=sflag, size = 0x4, scoped, tag = 'scoped memory for word2vec_forward.1']
  #allocation5 [shape = 'u8[512]{0}', space=smem, size = 0x200, scoped, tag = 'prefetched SMEM operand 0']
  #allocation6 [shape = 'u8[512]{0}', space=smem, size = 0x200, scoped, tag = 'prefetched SMEM operand 1']
  %s0 = inlined_call_operand.vmem [shape: s32[16], index: 0, kind: input, shape index: {}]
  %s1 = inlined_call_operand.vmem [shape: s32[16], index: 1, kind: input, shape index: {}]
  %s2 = inlined_call_operand.vmem [shape: f32[50,32], index: 2, kind: input, shape index: {}]
  %s3 = inlined_call_operand.vmem [shape: f32[50,32], index: 3, kind: input, shape index: {}]
  %s4 = inlined_call_operand.vmem [shape: f32[16,1], index: 4, kind: output, shape index: {}]
  %s5 = sld [smem:[#allocation0]]
  $region25: #{word2vec_forward.1} parent=0
    _
  %s7 = ssub.s32 1, %s5
  %s8 = scalar_select 0, %s7, %s5
  %s9 = sshll.u32 %s0, 4
  %s10 = int_to_ptr.vmem [resolvable:$true] %s9
  %12 = dma.vmem_to_smem %s10, 16, [#allocation5], [#allocation4]
  %s13 = sshll.u32 %s1, 4
  %s14 = int_to_ptr.vmem [resolvable:$true] %s13
  %16 = dma.vmem_to_smem %s14, 16, [#allocation6], [#allocation4]
  %17 = dma.done [#allocation4], 32
  %18 = sfence
  // Predicated region
  $region2: #{word2vec_forward.1} parent=0 // pred_check
    _
  $region3: #{word2vec_forward.1} parent=0 // pred_check_branch
    %20 = sbr.rel (0) target = $region5
  $region4: #{word2vec_forward.1} parent=0 // pred_region
    _
  $region5: #{word2vec_forward.1} parent=0 // pred_fallthru
    _
  // Predicated region
  $region6: #{word2vec_forward.1} parent=0 // pred_check
    _
  $region7: #{word2vec_forward.1} parent=0 // pred_check_branch
    %22 = sbr.rel (0) target = $region9
  $region8: #{word2vec_forward.1} parent=0 // pred_region
    _
  $region9: #{word2vec_forward.1} parent=0 // pred_fallthru
    _
  %s23 = smul.u32 0, 16
  loop: start=0, step=1, limit=16
  $region10: #{word2vec_forward.1} parent=0 // loop_pre_header
    _
  $region11: #{word2vec_forward.1} parent=0 // loop_header
    %s25 = sphi 0, %s29
    %p26 = scmp.ge.s32.totalorder %s25, 16
  $region12: #{word2vec_forward.1} parent=0 // loop_header_branch
    %28 = sbr.rel (%p26) target = $region16
  $region13: #{word2vec_forward.1} parent=0 // loop_body
    %s30 = sadd.s32 %s23, %s25
    %s31 = sld [smem:[#allocation5 + %s30]]
    %s32 = sld [smem:[#allocation6 + %s30]]
    %s33 = scalar_lea.vmem %s2, %s31
    %v34 = vld [vmem:[%s33] sm:$0x1]
    %s35 = scalar_lea.vmem [#allocation2], %s25
    %vm36 = vcmask 253952
    %37 = vst.msk [vmem:[%s35] sm:$0x1] %vm36, %v34
    %s38 = scalar_lea.vmem %s3, %s32
    %v39 = vld [vmem:[%s38] sm:$0x1]
    %s40 = scalar_lea.vmem [#allocation3], %s25
    %41 = vst.msk [vmem:[%s40] sm:$0x1] %vm36, %v39
  $region14: #{word2vec_forward.1} parent=0 // loop_footer
    %s29 = sadd.s32 1, %s25
  $region15: #{word2vec_forward.1} parent=0 // loop_footer_branch
    %24 = sbr.rel target = $region11
  $region16: #{word2vec_forward.1} parent=0 // loop_exit
    _
  %v42 = vld [vmem:[#allocation2] sm:$0xff]
  %v43 = vld [vmem:[#allocation2 + $0x8] sm:$0xff]
  %v44 = vld [vmem:[#allocation3] sm:$0xff]
  %v45 = vld [vmem:[#allocation3 + $0x8] sm:$0xff]
  %v46 = vmul.f32 %v42, %v44
  %v47 = vmul.f32 %v43, %v45
  %vm48 = vcmask 261120
  %v49 = vsel %vm48, %v46, 0.0
  %50 = vadd.xlane.f32.xlu0 %v49
  %v51 = vpop.xlane.xlu0 %50
  %v52 = vsel %vm48, %v47, 0.0
  %53 = vadd.xlane.f32.xlu0 %v52
  %v54 = vpop.xlane.xlu0 %53
  %vm55 = vcmask 7168
  %56 = vst.msk [vmem:[%s4] sm:$0xff] %vm55, %v51
  %57 = vst.msk [vmem:[%s4 + $0x8] sm:$0xff] %vm55, %v54
  // Predicated region
  $region17: #{word2vec_forward.1} parent=0 // pred_check
    _
  $region18: #{word2vec_forward.1} parent=0 // pred_check_branch
    %59 = sbr.rel (0) target = $region20
  $region19: #{word2vec_forward.1} parent=0 // pred_region
    _
  $region20: #{word2vec_forward.1} parent=0 // pred_fallthru
    _
  // Predicated region
  $region21: #{word2vec_forward.1} parent=0 // pred_check
    _
  $region22: #{word2vec_forward.1} parent=0 // pred_check_branch
    %61 = sbr.rel (0) target = $region24
  $region23: #{word2vec_forward.1} parent=0 // pred_region
    _
  $region24: #{word2vec_forward.1} parent=0 // pred_fallthru
    _

</llo_original>
